<compile_context>
chip_gen: v7x
topology: tpu7x:2x2x1
jax: 0.10.0
libtpu: 0.0.40
codegen_flags: <defaults>
</compile_context>

<pallas_src>
import functools

import jax
import jax.numpy as jnp
from jax.experimental import pallas as pl
from jax.experimental.pallas import tpu as pltpu

EPS = 1e-3
_LANE = 128
_MAX_STATIC_CHUNKS = 16       # statically unroll up to this many 128-lane chunks
_MAX_CHUNKS_PER_TILE = 256    # cap tile size so the chunk loop stays modest


def _round_up(x, m):
    return (x + m - 1) // m * m


@functools.lru_cache(maxsize=1)
def _vmem_capacity_bytes():
    try:
        return int(pltpu.get_tpu_info().vmem_capacity_bytes)
    except Exception:
        return 64 << 20  # conservative (v7x per-TC physical VMEM)


def _tiling_config(c, hw, itemsize):
    """Pick lane-tile size (multiple of 128) and an optional vmem_limit_bytes."""
    vmem_cap = _vmem_capacity_bytes()
    if vmem_cap >= (96 << 20):
        # v5e / v6e: 128 MiB physical VMEM -> bigger blocks; raise the scoped limit
        # (v5e's default is only 16 MiB and pass 2 holds 4 live block buffers).
        per_buf_budget = 4 << 20
        vmem_limit = 64 << 20
    else:
        # v7x: 64 MiB physical VMEM, 32 MiB scoped default -> stay conservative.
        per_buf_budget = 2 << 20
        vmem_limit = None

    c_pad = _round_up(max(int(c), 1), 8)
    hw_pad = _round_up(int(hw), _LANE)
    max_tile = max(_LANE, (per_buf_budget // (c_pad * itemsize)) // _LANE * _LANE)
    max_tile = min(max_tile, _MAX_CHUNKS_PER_TILE * _LANE)
    tile_hw = int(min(hw_pad, max_tile))
    return tile_hw, vmem_limit


def _stats_kernel(x_ref, psum_ref, psq_ref, *, hw, tile_hw):
    # x_ref:    (C, tile_hw) input dtype   (batch dim squeezed by BlockSpec)
    # psum_ref: (C, 128) f32 per-N partial sum       (output block, resident across t)
    # psq_ref:  (C, 128) f32 per-N partial sum-of-sq (output block, resident across t)
    t = pl.program_id(1)

    @pl.when(t == 0)
    def _init():
        psum_ref[...] = jnp.zeros_like(psum_ref)
        psq_ref[...] = jnp.zeros_like(psq_ref)

    num_chunks = tile_hw // _LANE

    def _accum(k, masked):
        off = k * _LANE
        if not isinstance(off, int):
            off = pl.multiple_of(off, _LANE)
        chunk = x_ref[:, pl.ds(off, _LANE)].astype(jnp.float32)  # (C, 128)
        if masked:
            lane = jax.lax.broadcasted_iota(jnp.int32, chunk.shape, 1)
            pos = t * tile_hw + k * _LANE + lane
            chunk = jnp.where(pos < hw, chunk, 0.0)
        # Accumulate straight into the resident VMEM output block (no vreg-file
        # accumulators -> no spill at large C; ld/st slots have slack here).
        psum_ref[...] += chunk
        psq_ref[...] += chunk * chunk

    def _run(masked):
        if num_chunks <= _MAX_STATIC_CHUNKS:
            for k in range(num_chunks):
                _accum(k, masked)
        else:
            def body(k, carry):
                _accum(k, masked)
                return carry
            jax.lax.fori_loop(0, num_chunks, body, 0, unroll=8)

    if hw % tile_hw == 0:
        _run(masked=False)
    else:
        # Only the very last HW tile can be ragged; pay the mask only there.
        @pl.when(t < pl.num_programs(1) - 1)
        def _full():
            _run(masked=False)

        @pl.when(t == pl.num_programs(1) - 1)
        def _tail():
            _run(masked=True)


def _normalize_kernel(x_ref, scale_ref, shift_ref, o_ref):
    # Minimal per-element body: upcast, fma-equivalent, relu, downcast store.
    x = x_ref[...].astype(jnp.float32)
    y = jnp.maximum(x * scale_ref[...] + shift_ref[...], 0.0)
    o_ref[...] = y.astype(o_ref.dtype)


@jax.jit
def pre_activation(x_nchw, gamma, beta):
    """x_nchw: (N, C, H, W) float; gamma, beta: (C,). Returns (N, C, H, W) in x's dtype."""
    N, C, H, W = x_nchw.shape
    hw = H * W
    nhw = N * hw

    x3 = x_nchw.reshape(N, C, hw)            # free view of contiguous NCHW, native dtype
    itemsize = jnp.dtype(x_nchw.dtype).itemsize
    tile_hw, vmem_limit = _tiling_config(C, hw, itemsize)
    num_t = pl.cdiv(hw, tile_hw)

    cp_kwargs = {}
    if vmem_limit is not None:
        cp_kwargs["vmem_limit_bytes"] = vmem_limit

    # --- Pass 1: per-(N, C) partial sums / sums-of-squares ---------------------------
    psum, psq = pl.pallas_call(
        functools.partial(_stats_kernel, hw=hw, tile_hw=tile_hw),
        out_shape=(jax.ShapeDtypeStruct((N, C, _LANE), jnp.float32),
                   jax.ShapeDtypeStruct((N, C, _LANE), jnp.float32)),
        grid=(N, num_t),
        in_specs=[
            pl.BlockSpec((None, C, tile_hw), lambda n, t: (n, 0, t)),
        ],
        out_specs=(
            pl.BlockSpec((None, C, _LANE), lambda n, t: (n, 0, 0)),
            pl.BlockSpec((None, C, _LANE), lambda n, t: (n, 0, 0)),
        ),
        compiler_params=pltpu.CompilerParams(
            dimension_semantics=("parallel", "arbitrary"), **cp_kwargs),
    )(x3)

    # --- Finalize (tiny, plain JAX): mean/var -> scale/shift --------------------------
    # TODO(synk): E[x^2]-mean^2 in f32 is cancellation-prone when |mean| >> std; a
    # hierarchical/Welford combine would be more robust if exact PyTorch parity matters.
    inv_count = jnp.float32(1.0 / float(nhw))
    s = jnp.sum(psum, axis=(0, 2))                          # (C,)
    sq = jnp.sum(psq, axis=(0, 2))                          # (C,)
    mean = s * inv_count
    var = jnp.maximum(sq * inv_count - mean * mean, 0.0)    # biased (training-mode) var
    inv_std = jax.lax.rsqrt(var + EPS)
    g = gamma.astype(jnp.float32)
    b = beta.astype(jnp.float32)
    scale = (g * inv_std).reshape(C, 1)
    shift = (b - mean * g * inv_std).reshape(C, 1)

    # --- Pass 2: y = relu(x * scale + shift), stored in the input dtype ---------------
    out3 = pl.pallas_call(
        _normalize_kernel,
        out_shape=jax.ShapeDtypeStruct((N, C, hw), x_nchw.dtype),
        grid=(N, num_t),
        in_specs=[
            pl.BlockSpec((None, C, tile_hw), lambda n, t: (n, 0, t)),
            pl.BlockSpec((C, 1), lambda n, t: (0, 0)),
            pl.BlockSpec((C, 1), lambda n, t: (0, 0)),
        ],
        out_specs=pl.BlockSpec((None, C, tile_hw), lambda n, t: (n, 0, t)),
        compiler_params=pltpu.CompilerParams(
            dimension_semantics=("parallel", "parallel"), **cp_kwargs),
    )(x3, scale, shift)

    return out3.reshape(N, C, H, W)


def _reference(x_nchw, gamma, beta):
    # Pure-JAX reference mirroring PyTorch training-mode BN (biased var) + ReLU.
    x = x_nchw.astype(jnp.float32)
    mean = jnp.mean(x, axis=(0, 2, 3), keepdims=True)
    var = jnp.mean((x - mean) ** 2, axis=(0, 2, 3), keepdims=True)
    y = (x - mean) * jax.lax.rsqrt(var + EPS)
    y = y * gamma.reshape(1, -1, 1, 1) + beta.reshape(1, -1, 1, 1)
    return jnp.maximum(y, 0.0)


if __name__ == "__main__":
    key = jax.random.PRNGKey(0)
    kx, kg, kb = jax.random.split(key, 3)

    N, C, H, W = 2, 4, 16, 16
    x = jax.random.normal(kx, (N, C, H, W), dtype=jnp.float32)
    # BatchNorm2d params: PyTorch init is gamma=1, beta=0; perturb so the affine is non-trivial.
    gamma = 1.0 + 0.1 * jax.random.normal(kg, (C,), dtype=jnp.float32)
    beta = 0.1 * jax.random.normal(kb, (C,), dtype=jnp.float32)

    # f32 path (exact vs reference).
    out = jax.block_until_ready(pre_activation(x, gamma, beta))
    ref = _reference(x, gamma, beta)
    assert out.shape == (N, C, H, W)
    assert out.dtype == x.dtype
    assert jnp.max(jnp.abs(out - ref)) < 1e-4, "f32 mismatch vs reference"

    # bf16 path (native-dtype HBM I/O; compute still in f32 inside the kernel).
    xb = x.astype(jnp.bfloat16)
    out_b = jax.block_until_ready(pre_activation(xb, gamma, beta))
    ref_b = _reference(xb, gamma, beta)
    assert out_b.dtype == jnp.bfloat16
    assert jnp.max(jnp.abs(out_b.astype(jnp.float32) - ref_b)) < 5e-2, "bf16 mismatch vs reference"

    print("KERNEL_OK")
</pallas_src>

<mosaic_0001>
module attributes {stable_mosaic.version = 11 : i64} {
  func.func @_stats_kernel(%arg0: i32, %arg1: i32, %arg2: memref<1x4x256xf32, #tpu.memory_space<vmem>>, %arg3: memref<1x4x128xf32, #tpu.memory_space<vmem>>, %arg4: memref<1x4x128xf32, #tpu.memory_space<vmem>>) attributes {dimension_semantics = [#tpu.dimension_semantics<parallel>, #tpu.dimension_semantics<arbitrary>], iteration_bounds = array<i64: 2, 1>, scalar_prefetch = 0 : i64, scratch_operands = 0 : i64, tpu.core_type = #tpu.core_type<tc>, window_params = [{transform_indices = @transform_0, window_bounds = array<i64: 1, 4, 256>}, {transform_indices = @transform_1, window_bounds = array<i64: 1, 4, 128>}, {transform_indices = @transform_2, window_bounds = array<i64: 1, 4, 128>}]} {
    %c0_i32 = arith.constant 0 : i32
    %0 = arith.cmpi eq, %arg1, %c0_i32 : i32
    %1 = arith.extui %0 : i1 to i32
    %c0_i32_0 = arith.constant 0 : i32
    %2 = arith.cmpi ne, %1, %c0_i32_0 : i32
    scf.if %2 {
      %cst = arith.constant 0.000000e+00 : f32
      %33 = vector.broadcast %cst : f32 to vector<4x128xf32>
      %c0_29 = arith.constant 0 : index
      %c0_30 = arith.constant 0 : index
      %c0_31 = arith.constant 0 : index
      %34 = vector.load %arg3[%c0_29, %c0_30, %c0_31] : memref<1x4x128xf32, #tpu.memory_space<vmem>>, vector<1x4x128xf32>
      %35 = vector.shape_cast %34 : vector<1x4x128xf32> to vector<4x128xf32>
      %36 = vector.shape_cast %33 : vector<4x128xf32> to vector<1x4x128xf32>
      tpu.vector_store %arg3[%c0_29, %c0_30, %c0_31], %36 {strides = array<i32>} : memref<1x4x128xf32, #tpu.memory_space<vmem>>, vector<1x4x128xf32>,
      %cst_32 = arith.constant 0.000000e+00 : f32
      %37 = vector.broadcast %cst_32 : f32 to vector<4x128xf32>
      %c0_33 = arith.constant 0 : index
      %c0_34 = arith.constant 0 : index
      %c0_35 = arith.constant 0 : index
      %38 = vector.load %arg4[%c0_33, %c0_34, %c0_35] : memref<1x4x128xf32, #tpu.memory_space<vmem>>, vector<1x4x128xf32>
      %39 = vector.shape_cast %38 : vector<1x4x128xf32> to vector<4x128xf32>
      %40 = vector.shape_cast %37 : vector<4x128xf32> to vector<1x4x128xf32>
      tpu.vector_store %arg4[%c0_33, %c0_34, %c0_35], %40 {strides = array<i32>} : memref<1x4x128xf32, #tpu.memory_space<vmem>>, vector<1x4x128xf32>,
    } else {
    }
    %c0 = arith.constant 0 : index
    %c0_1 = arith.constant 0 : index
    %c0_2 = arith.constant 0 : index
    %3 = vector.load %arg2[%c0, %c0_1, %c0_2] : memref<1x4x256xf32, #tpu.memory_space<vmem>>, vector<1x4x128xf32>
    %4 = vector.shape_cast %3 : vector<1x4x128xf32> to vector<4x128xf32>
    %c0_3 = arith.constant 0 : index
    %c0_4 = arith.constant 0 : index
    %c0_5 = arith.constant 0 : index
    %5 = vector.load %arg3[%c0_3, %c0_4, %c0_5] : memref<1x4x128xf32, #tpu.memory_space<vmem>>, vector<1x4x128xf32>
    %6 = vector.shape_cast %5 : vector<1x4x128xf32> to vector<4x128xf32>
    %7 = arith.addf %6, %4 : vector<4x128xf32>
    %c0_6 = arith.constant 0 : index
    %c0_7 = arith.constant 0 : index
    %c0_8 = arith.constant 0 : index
    %8 = vector.load %arg3[%c0_6, %c0_7, %c0_8] : memref<1x4x128xf32, #tpu.memory_space<vmem>>, vector<1x4x128xf32>
    %9 = vector.shape_cast %8 : vector<1x4x128xf32> to vector<4x128xf32>
    %10 = vector.shape_cast %7 : vector<4x128xf32> to vector<1x4x128xf32>
    tpu.vector_store %arg3[%c0_6, %c0_7, %c0_8], %10 {strides = array<i32>} : memref<1x4x128xf32, #tpu.memory_space<vmem>>, vector<1x4x128xf32>,
    %c0_9 = arith.constant 0 : index
    %c0_10 = arith.constant 0 : index
    %c0_11 = arith.constant 0 : index
    %11 = vector.load %arg4[%c0_9, %c0_10, %c0_11] : memref<1x4x128xf32, #tpu.memory_space<vmem>>, vector<1x4x128xf32>
    %12 = vector.shape_cast %11 : vector<1x4x128xf32> to vector<4x128xf32>
    %13 = arith.mulf %4, %4 : vector<4x128xf32>
    %14 = arith.addf %12, %13 : vector<4x128xf32>
    %c0_12 = arith.constant 0 : index
    %c0_13 = arith.constant 0 : index
    %c0_14 = arith.constant 0 : index
    %15 = vector.load %arg4[%c0_12, %c0_13, %c0_14] : memref<1x4x128xf32, #tpu.memory_space<vmem>>, vector<1x4x128xf32>
    %16 = vector.shape_cast %15 : vector<1x4x128xf32> to vector<4x128xf32>
    %17 = vector.shape_cast %14 : vector<4x128xf32> to vector<1x4x128xf32>
    tpu.vector_store %arg4[%c0_12, %c0_13, %c0_14], %17 {strides = array<i32>} : memref<1x4x128xf32, #tpu.memory_space<vmem>>, vector<1x4x128xf32>,
    %c0_15 = arith.constant 0 : index
    %c0_16 = arith.constant 0 : index
    %c128 = arith.constant 128 : index
    %18 = vector.load %arg2[%c0_15, %c0_16, %c128] : memref<1x4x256xf32, #tpu.memory_space<vmem>>, vector<1x4x128xf32>
    %19 = vector.shape_cast %18 : vector<1x4x128xf32> to vector<4x128xf32>
    %c0_17 = arith.constant 0 : index
    %c0_18 = arith.constant 0 : index
    %c0_19 = arith.constant 0 : index
    %20 = vector.load %arg3[%c0_17, %c0_18, %c0_19] : memref<1x4x128xf32, #tpu.memory_space<vmem>>, vector<1x4x128xf32>
    %21 = vector.shape_cast %20 : vector<1x4x128xf32> to vector<4x128xf32>
    %22 = arith.addf %21, %19 : vector<4x128xf32>
    %c0_20 = arith.constant 0 : index
    %c0_21 = arith.constant 0 : index
    %c0_22 = arith.constant 0 : index
    %23 = vector.load %arg3[%c0_20, %c0_21, %c0_22] : memref<1x4x128xf32, #tpu.memory_space<vmem>>, vector<1x4x128xf32>
    %24 = vector.shape_cast %23 : vector<1x4x128xf32> to vector<4x128xf32>
    %25 = vector.shape_cast %22 : vector<4x128xf32> to vector<1x4x128xf32>
    tpu.vector_store %arg3[%c0_20, %c0_21, %c0_22], %25 {strides = array<i32>} : memref<1x4x128xf32, #tpu.memory_space<vmem>>, vector<1x4x128xf32>,
    %c0_23 = arith.constant 0 : index
    %c0_24 = arith.constant 0 : index
    %c0_25 = arith.constant 0 : index
    %26 = vector.load %arg4[%c0_23, %c0_24, %c0_25] : memref<1x4x128xf32, #tpu.memory_space<vmem>>, vector<1x4x128xf32>
    %27 = vector.shape_cast %26 : vector<1x4x128xf32> to vector<4x128xf32>
    %28 = arith.mulf %19, %19 : vector<4x128xf32>
    %29 = arith.addf %27, %28 : vector<4x128xf32>
    %c0_26 = arith.constant 0 : index
    %c0_27 = arith.constant 0 : index
    %c0_28 = arith.constant 0 : index
    %30 = vector.load %arg4[%c0_26, %c0_27, %c0_28] : memref<1x4x128xf32, #tpu.memory_space<vmem>>, vector<1x4x128xf32>
    %31 = vector.shape_cast %30 : vector<1x4x128xf32> to vector<4x128xf32>
    %32 = vector.shape_cast %29 : vector<4x128xf32> to vector<1x4x128xf32>
    tpu.vector_store %arg4[%c0_26, %c0_27, %c0_28], %32 {strides = array<i32>} : memref<1x4x128xf32, #tpu.memory_space<vmem>>, vector<1x4x128xf32>,
    return
  }
  func.func @transform_0(%arg0: i32, %arg1: i32) -> (i32, i32, i32) {
    %c0_i32 = arith.constant 0 : i32
    %c0_i32_0 = arith.constant 0 : i32
    return %arg0, %c0_i32, %arg1 : i32, i32, i32
  }
  func.func @transform_1(%arg0: i32, %arg1: i32) -> (i32, i32, i32) {
    %c0_i32 = arith.constant 0 : i32
    %c0_i32_0 = arith.constant 0 : i32
    %c0_i32_1 = arith.constant 0 : i32
    return %arg0, %c0_i32, %c0_i32_0 : i32, i32, i32
  }
  func.func @transform_2(%arg0: i32, %arg1: i32) -> (i32, i32, i32) {
    %c0_i32 = arith.constant 0 : i32
    %c0_i32_0 = arith.constant 0 : i32
    %c0_i32_1 = arith.constant 0 : i32
    return %arg0, %c0_i32, %c0_i32_0 : i32, i32, i32
  }
}

module attributes {stable_mosaic.version = 11 : i64} {
  func.func @_normalize_kernel(%arg0: i32, %arg1: i32, %arg2: memref<1x4x256xf32, #tpu.memory_space<vmem>>, %arg3: memref<4x1xf32, #tpu.memory_space<vmem>>, %arg4: memref<4x1xf32, #tpu.memory_space<vmem>>, %arg5: memref<1x4x256xf32, #tpu.memory_space<vmem>>) attributes {dimension_semantics = [#tpu.dimension_semantics<parallel>, #tpu.dimension_semantics<parallel>], iteration_bounds = array<i64: 2, 1>, scalar_prefetch = 0 : i64, scratch_operands = 0 : i64, tpu.core_type = #tpu.core_type<tc>, window_params = [{transform_indices = @transform_0, window_bounds = array<i64: 1, 4, 256>}, {pipeline_mode = #tpu.pipeline_mode<synchronous>, transform_indices = @transform_1, window_bounds = array<i64: 4, 1>}, {pipeline_mode = #tpu.pipeline_mode<synchronous>, transform_indices = @transform_2, window_bounds = array<i64: 4, 1>}, {transform_indices = @transform_3, window_bounds = array<i64: 1, 4, 256>}]} {
    %c0 = arith.constant 0 : index
    %c0_0 = arith.constant 0 : index
    %c0_1 = arith.constant 0 : index
    %0 = vector.load %arg2[%c0, %c0_0, %c0_1] : memref<1x4x256xf32, #tpu.memory_space<vmem>>, vector<1x4x256xf32>
    %1 = vector.shape_cast %0 : vector<1x4x256xf32> to vector<4x256xf32>
    %c0_2 = arith.constant 0 : index
    %c0_3 = arith.constant 0 : index
    %2 = vector.load %arg3[%c0_2, %c0_3] : memref<4x1xf32, #tpu.memory_space<vmem>>, vector<4x1xf32>
    %3 = vector.broadcast %2 : vector<4x1xf32> to vector<4x256xf32>
    %4 = arith.mulf %1, %3 : vector<4x256xf32>
    %c0_4 = arith.constant 0 : index
    %c0_5 = arith.constant 0 : index
    %5 = vector.load %arg4[%c0_4, %c0_5] : memref<4x1xf32, #tpu.memory_space<vmem>>, vector<4x1xf32>
    %6 = vector.broadcast %5 : vector<4x1xf32> to vector<4x256xf32>
    %7 = arith.addf %4, %6 : vector<4x256xf32>
    %cst = arith.constant 0.000000e+00 : f32
    %8 = vector.broadcast %cst : f32 to vector<4x256xf32>
    %9 = arith.maximumf %7, %8 : vector<4x256xf32>
    %c0_6 = arith.constant 0 : index
    %c0_7 = arith.constant 0 : index
    %c0_8 = arith.constant 0 : index
    %10 = vector.load %arg5[%c0_6, %c0_7, %c0_8] : memref<1x4x256xf32, #tpu.memory_space<vmem>>, vector<1x4x256xf32>
    %11 = vector.shape_cast %10 : vector<1x4x256xf32> to vector<4x256xf32>
    %12 = vector.shape_cast %9 : vector<4x256xf32> to vector<1x4x256xf32>
    tpu.vector_store %arg5[%c0_6, %c0_7, %c0_8], %12 {strides = array<i32>} : memref<1x4x256xf32, #tpu.memory_space<vmem>>, vector<1x4x256xf32>,
    return
  }
  func.func @transform_0(%arg0: i32, %arg1: i32) -> (i32, i32, i32) {
    %c0_i32 = arith.constant 0 : i32
    %c0_i32_0 = arith.constant 0 : i32
    return %arg0, %c0_i32, %arg1 : i32, i32, i32
  }
  func.func @transform_1(%arg0: i32, %arg1: i32) -> (i32, i32) {
    %c0_i32 = arith.constant 0 : i32
    %c0_i32_0 = arith.constant 0 : i32
    %c0_i32_1 = arith.constant 0 : i32
    return %c0_i32, %c0_i32_0 : i32, i32
  }
  func.func @transform_2(%arg0: i32, %arg1: i32) -> (i32, i32) {
    %c0_i32 = arith.constant 0 : i32
    %c0_i32_0 = arith.constant 0 : i32
    %c0_i32_1 = arith.constant 0 : i32
    return %c0_i32, %c0_i32_0 : i32, i32
  }
  func.func @transform_3(%arg0: i32, %arg1: i32) -> (i32, i32, i32) {
    %c0_i32 = arith.constant 0 : i32
    %c0_i32_0 = arith.constant 0 : i32
    return %arg0, %c0_i32, %arg1 : i32, i32, i32
  }
}

</mosaic_0001>

<llo_original>
// kernel: pre_activation.2
$region0: #{pre_activation.2}
  #allocation0 [shape = 'u32[]', space=smem, size = 0x4, offset = 0x4, fixed_abs, tag = 'smem constant byte address 0x4 - core index']
  #allocation1 [shape = 'u32[144,128]{1,0:T(1,128)}', space=vmem, size = 0x12000, scoped, tag = 'internal scratch']
  %s0 = inlined_call_operand.vmem [shape: f32[2,4,256], index: 0, kind: input, shape index: {}]
  %s1 = inlined_call_operand.vmem [shape: f32[2,4,128], index: 1, kind: output, shape index: {0}]
  %s2 = inlined_call_operand.vmem [shape: f32[2,4,128], index: 2, kind: output, shape index: {1}]
  %3 = xla_tuple %s1, %s2
  %s4 = sld [smem:[#allocation0]]
  $region49: #{pre_activation.2} parent=0
    _
  %s6 = ssub.s32 1, %s4
  %s7 = scalar_select 0, %s6, %s4
  loop: start=0, step=1, limit=4
  $region2: #{pre_activation.2} parent=0 // loop_pre_header
    _
  $region3: #{pre_activation.2} parent=0 // loop_header
    %s9 = sphi 0, %s13
    %p10 = scmp.ge.s32.totalorder %s9, 4
    %s16 = sphi 0, %s28
    %s17 = sphi 0, %s24
    %s18 = sphi 0, %s16
    %s19 = sphi 0, %s17
    %s20 = sphi 0, %s18
    %s21 = sphi 0, %s19
    %s33 = sphi 0, %s35
    %s36 = sphi 0, %s33
    %s37 = sphi 0, %s36
    %s53 = sphi 0, %s37
    %s59 = sphi 0, %s61
    %s62 = sphi 0, %s59
    %s63 = sphi 0, %s62
    %s79 = sphi 0, %s63
    %s85 = sphi 0, %s87
    %s88 = sphi 0, %s85
    %s89 = sphi 0, %s88
    %s105 = sphi 0, %s89
  $region4: #{pre_activation.2} parent=0 // loop_header_branch
    %12 = sbr.rel (%p10) target = $region8
  $region5: #{pre_activation.2} parent=0 // loop_body
    %s14 = ssub.s32 %s9, 1
    %s15 = ssub.s32 %s9, 2
    %s22 = sadd.s32 1, %s17
    %p23 = scmp.ge.s32.totalorder %s22, 1
    %s24 = scalar_select %p23, 0, %s22
    %s25 = sadd.s32 1, %s16
    %s26 = scalar_select %p23, %s25, %s16
    %p27 = scmp.ge.s32.totalorder %s26, 2
    %s28 = scalar_select %p27, 0, %s26
    %s29 = ssub.s32 %s16, %s28
    %s30 = ssub.s32 %s17, %s24
    %s31 = sor.u32 %s29, %s30
    %p32 = scmp.eq.s32.totalorder %s31, 0
    %s34 = sadd.s32 %s33, 1
    %s35 = scalar_select %p32, %s33, %s34
    %p38 = pneg %p32
    %p39 = scmp.eq.s32.totalorder %s9, 1
    %p40 = por %p38, %p39
    %p41 = scmp.ne.s32.totalorder %s33, %s36
    %p42 = scmp.eq.s32.totalorder %s9, 0
    %p43 = por %p41, %p42
    %p44 = scmp.ne.s32.totalorder %s33, %s36
    %p45 = scmp.eq.s32.totalorder %s14, 1
    %p46 = por %p44, %p45
    %p47 = scmp.ne.s32.totalorder %s36, %s37
    %p48 = scmp.eq.s32.totalorder %s14, 0
    %p49 = por %p47, %p48
    %p50 = scmp.ne.s32.totalorder %s36, %s37
    %p51 = scmp.eq.s32.totalorder %s15, 1
    %p52 = por %p50, %p51
    %p54 = scmp.ne.s32.totalorder %s37, %s53
    %p55 = scmp.eq.s32.totalorder %s15, 0
    %p56 = por %p54, %p55
    %s57 = ssub.s32 %s16, %s28
    %p58 = scmp.eq.s32.totalorder %s57, 0
    %s60 = sadd.s32 %s59, 1
    %s61 = scalar_select %p58, %s59, %s60
    %p64 = pneg %p58
    %p65 = scmp.eq.s32.totalorder %s9, 1
    %p66 = por %p64, %p65
    %p67 = scmp.ne.s32.totalorder %s59, %s62
    %p68 = scmp.eq.s32.totalorder %s9, 0
    %p69 = por %p67, %p68
    %p70 = scmp.ne.s32.totalorder %s59, %s62
    %p71 = scmp.eq.s32.totalorder %s14, 1
    %p72 = por %p70, %p71
    %p73 = scmp.ne.s32.totalorder %s62, %s63
    %p74 = scmp.eq.s32.totalorder %s14, 0
    %p75 = por %p73, %p74
    %p76 = scmp.ne.s32.totalorder %s62, %s63
    %p77 = scmp.eq.s32.totalorder %s15, 1
    %p78 = por %p76, %p77
    %p80 = scmp.ne.s32.totalorder %s63, %s79
    %p81 = scmp.eq.s32.totalorder %s15, 0
    %p82 = por %p80, %p81
    %s83 = ssub.s32 %s16, %s28
    %p84 = scmp.eq.s32.totalorder %s83, 0
    %s86 = sadd.s32 %s85, 1
    %s87 = scalar_select %p84, %s85, %s86
    %p90 = pneg %p84
    %p91 = scmp.eq.s32.totalorder %s9, 1
    %p92 = por %p90, %p91
    %p93 = scmp.ne.s32.totalorder %s85, %s88
    %p94 = scmp.eq.s32.totalorder %s9, 0
    %p95 = por %p93, %p94
    %p96 = scmp.ne.s32.totalorder %s85, %s88
    %p97 = scmp.eq.s32.totalorder %s14, 1
    %p98 = por %p96, %p97
    %p99 = scmp.ne.s32.totalorder %s88, %s89
    %p100 = scmp.eq.s32.totalorder %s14, 0
    %p101 = por %p99, %p100
    %p102 = scmp.ne.s32.totalorder %s88, %s89
    %p103 = scmp.eq.s32.totalorder %s15, 1
    %p104 = por %p102, %p103
    %p106 = scmp.ne.s32.totalorder %s89, %s105
    %p107 = scmp.eq.s32.totalorder %s15, 0
    %p108 = por %p106, %p107
    %p109 = scmp.le.s32.totalorder 1, %s9
    %p110 = scmp.lt.s32.totalorder %s9, 3
    %p111 = pnand %p109, %p110
    %p112 = pneg %p111
    // Predicated region
    $region9: #{pre_activation.2} parent=5 // pred_check
      _
    $region10: #{pre_activation.2} parent=5 // pred_check_branch
      %114 = sbr.rel (%p111) target = $region12
    $region11: #{pre_activation.2} parent=5 // pred_region
      %s115 = ssub.s32 %s9, 1
    $region12: #{pre_activation.2} parent=5 // pred_fallthru
      _
    %p116 = scmp.lt.s32.totalorder %s9, 2
    // Predicated region
    $region13: #{pre_activation.2} parent=5 // pred_check
      %p117 = pneg %p116
    $region14: #{pre_activation.2} parent=5 // pred_check_branch
      %119 = sbr.rel (%p117) target = $region16
    $region15: #{pre_activation.2} parent=5 // pred_region
      // Predicated region
      $region17: #{pre_activation.2} parent=15 // pred_check
        %p120 = pneg %p43
      $region18: #{pre_activation.2} parent=15 // pred_check_branch
        %122 = sbr.rel (%p120) target = $region20
      $region19: #{pre_activation.2} parent=15 // pred_region
        %s123 = smul.u32 2, %s17
        %p124 = scmp.lt.s32.totalorder %s16, 1
        %s125 = scalar_select %p124, %s16, 1
        %p126 = scmp.lt.s32.totalorder %s123, 1
        %s127 = scalar_select %p126, %s123, 1
        %s128 = smul.addr %s125, 2
        %s129 = sadd.s32 %s127, %s128
        %s130 = smul.addr %s129, 4
        %s131 = scalar_lea.vmem %s0, %s130
        %s132 = smul.u32 2, %s17
      $region20: #{pre_activation.2} parent=15 // pred_fallthru
        _
    $region16: #{pre_activation.2} parent=5 // pred_fallthru
      _
    %p133 = scmp.le.s32.totalorder 1, %s9
    %p134 = scmp.lt.s32.totalorder %s9, 3
    %p135 = pnand %p133, %p134
    %p136 = pneg %p135
    // Predicated region
    $region21: #{pre_activation.2} parent=5 // pred_check
      _
    $region22: #{pre_activation.2} parent=5 // pred_check_branch
      %138 = sbr.rel (%p135) target = $region24
    $region23: #{pre_activation.2} parent=5 // pred_region
      %s139 = ssub.s32 %s9, 1
      %s140 = smul.u32 2, %s19
      %p141 = scmp.lt.s32.totalorder %s18, 1
      %s142 = scalar_select %p141, %s18, 1
      %p143 = scmp.lt.s32.totalorder %s140, 1
      %s144 = scalar_select %p143, %s140, 1
      %s145 = smul.addr %s142, 2
      %s146 = sadd.s32 %s144, %s145
      %s147 = smul.addr %s146, 4
      %s148 = scalar_lea.vmem %s0, %s147
      %p149 = pneg %p49
      %p150 = pneg %p46
      %p151 = pneg %p75
      %p152 = pneg %p72
      %p153 = scmp.lt.s32.totalorder %s18, 1
      %s154 = scalar_select %p153, %s18, 1
      %s155 = smul.addr %s154, 4
      %s156 = scalar_lea.vmem %s1, %s155
      %p157 = pneg %p101
      %p158 = pneg %p98
      %p159 = scmp.lt.s32.totalorder %s18, 1
      %s160 = scalar_select %p159, %s18, 1
      %s161 = smul.addr %s160, 4
      %s162 = scalar_lea.vmem %s2, %s161
      %s163 = smul.u32 2, %s19
      %p164 = scmp.lt.s32.totalorder %s18, 1
      %s165 = scalar_select %p164, %s18, 1
      %p166 = scmp.lt.s32.totalorder %s163, 1
      %s167 = scalar_select %p166, %s163, 1
      %s168 = smul.addr %s165, 2
      %s169 = sadd.s32 %s167, %s168
      %s170 = smul.addr %s169, 4
      %s171 = scalar_lea.vmem %s0, %s170
      %s172 = smul.u32 2, %s19
      %p173 = scmp.lt.s32.totalorder %s18, 1
      %s174 = scalar_select %p173, %s18, 1
      %s175 = smul.addr %s174, 4
      %s176 = scalar_lea.vmem %s1, %s175
      %p177 = scmp.lt.s32.totalorder %s18, 1
      %s178 = scalar_select %p177, %s18, 1
      %s179 = smul.addr %s178, 4
      %s180 = scalar_lea.vmem %s2, %s179
      %p181 = scmp.eq.s32.totalorder %s19, 0
      // Predicated region
      $region25: #{pre_activation.2} parent=23 // pred_check
        %p182 = pneg %p181
      $region26: #{pre_activation.2} parent=23 // pred_check_branch
        %184 = sbr.rel (%p182) target = $region28
      $region27: #{pre_activation.2} parent=23 // pred_region
        %185 = vst [vmem:[%s176] sm:$0xf] 0.0
        %186 = vst [vmem:[%s180] sm:$0xf] 0.0
      $region28: #{pre_activation.2} parent=23 // pred_fallthru
        _
      %v187 = vld [vmem:[%s171] sm:$0xf]
      %v188 = vld [vmem:[%s176] sm:$0xf]
      %v189 = vadd.f32 %v188, %v187
      %190 = vst [vmem:[%s176] sm:$0xf] %v189
      %v191 = vld [vmem:[%s180] sm:$0xf]
      %v192 = vmul.f32 %v187, %v187
      %v193 = vadd.f32 %v191, %v192
      %194 = vst [vmem:[%s180] sm:$0xf] %v193
      %v195 = vld [vmem:[%s171 + $0x4] sm:$0xf]
      %v196 = vld [vmem:[%s176] sm:$0xf]
      %v197 = vadd.f32 %v196, %v195
      %198 = vst [vmem:[%s176] sm:$0xf] %v197
      %v199 = vld [vmem:[%s180] sm:$0xf]
      %v200 = vmul.f32 %v195, %v195
      %v201 = vadd.f32 %v199, %v200
      %202 = vst [vmem:[%s180] sm:$0xf] %v201
      %p203 = scmp.lt.s32.totalorder %s18, 1
      %s204 = scalar_select %p203, %s18, 1
      %s205 = smul.addr %s204, 4
      %s206 = scalar_lea.vmem %s1, %s205
      %p207 = scmp.lt.s32.totalorder %s18, 1
      %s208 = scalar_select %p207, %s18, 1
      %s209 = smul.addr %s208, 4
      %s210 = scalar_lea.vmem %s2, %s209
      // Predicated region
      $region29: #{pre_activation.2} parent=23 // pred_check
        %p211 = pneg %p72
      $region30: #{pre_activation.2} parent=23 // pred_check_branch
        %213 = sbr.rel (%p211) target = $region32
      $region31: #{pre_activation.2} parent=23 // pred_region
        _
      $region32: #{pre_activation.2} parent=23 // pred_fallthru
        _
      // Predicated region
      $region33: #{pre_activation.2} parent=23 // pred_check
        %p214 = pneg %p98
      $region34: #{pre_activation.2} parent=23 // pred_check_branch
        %216 = sbr.rel (%p214) target = $region36
      $region35: #{pre_activation.2} parent=23 // pred_region
        _
      $region36: #{pre_activation.2} parent=23 // pred_fallthru
        _
    $region24: #{pre_activation.2} parent=5 // pred_fallthru
      _
    %p217 = scmp.le.s32.totalorder 2, %s9
    // Predicated region
    $region37: #{pre_activation.2} parent=5 // pred_check
      %p218 = pneg %p217
    $region38: #{pre_activation.2} parent=5 // pred_check_branch
      %220 = sbr.rel (%p218) target = $region40
    $region39: #{pre_activation.2} parent=5 // pred_region
      %s221 = ssub.s32 %s9, 2
      // Predicated region
      $region41: #{pre_activation.2} parent=39 // pred_check
        %p222 = pneg %p78
      $region42: #{pre_activation.2} parent=39 // pred_check_branch
        %224 = sbr.rel (%p222) target = $region44
      $region43: #{pre_activation.2} parent=39 // pred_region
        %p225 = scmp.lt.s32.totalorder %s20, 1
        %s226 = scalar_select %p225, %s20, 1
        %s227 = smul.addr %s226, 4
        %s228 = scalar_lea.vmem %s1, %s227
      $region44: #{pre_activation.2} parent=39 // pred_fallthru
        _
      // Predicated region
      $region45: #{pre_activation.2} parent=39 // pred_check
        %p229 = pneg %p104
      $region46: #{pre_activation.2} parent=39 // pred_check_branch
        %231 = sbr.rel (%p229) target = $region48
      $region47: #{pre_activation.2} parent=39 // pred_region
        %p232 = scmp.lt.s32.totalorder %s20, 1
        %s233 = scalar_select %p232, %s20, 1
        %s234 = smul.addr %s233, 4
        %s235 = scalar_lea.vmem %s2, %s234
      $region48: #{pre_activation.2} parent=39 // pred_fallthru
        _
    $region40: #{pre_activation.2} parent=5 // pred_fallthru
      _
  $region6: #{pre_activation.2} parent=0 // loop_footer
    %s13 = sadd.s32 1, %s9
  $region7: #{pre_activation.2} parent=0 // loop_footer_branch
    %8 = sbr.rel target = $region3
  $region8: #{pre_activation.2} parent=0 // loop_exit
    _

// kernel: pre_activation.3
$region0: #{pre_activation.3}
  #allocation0 [shape = 'u32[]', space=smem, size = 0x4, offset = 0x4, fixed_abs, tag = 'smem constant byte address 0x4 - core index']
  #allocation1 [shape = 'u32[144,128]{1,0:T(1,128)}', space=vmem, size = 0x12000, scoped, tag = 'internal scratch']
  %s0 = inlined_call_operand.vmem [shape: f32[2,4,256], index: 0, kind: input, shape index: {}]
  %s1 = inlined_call_operand.vmem [shape: f32[4,1], index: 1, kind: input, shape index: {}]
  %s2 = inlined_call_operand.vmem [shape: f32[4,1], index: 2, kind: input, shape index: {}]
  %s3 = inlined_call_operand.vmem [shape: f32[2,4,256], index: 3, kind: output, shape index: {}]
  %s4 = sld [smem:[#allocation0]]
  $region45: #{pre_activation.3} parent=0
    _
  %s6 = ssub.s32 1, %s4
  %s7 = scalar_select 0, %s6, %s4
  loop: start=0, step=1, limit=4
  $region2: #{pre_activation.3} parent=0 // loop_pre_header
    _
  $region3: #{pre_activation.3} parent=0 // loop_header
    %s9 = sphi 0, %s13
    %p10 = scmp.ge.s32.totalorder %s9, 4
    %s16 = sphi 0, %s28
    %s17 = sphi 0, %s24
    %s18 = sphi 0, %s16
    %s19 = sphi 0, %s17
    %s20 = sphi 0, %s18
    %s21 = sphi 0, %s19
    %s33 = sphi 0, %s35
    %s36 = sphi 0, %s33
    %s37 = sphi 0, %s36
    %s53 = sphi 0, %s37
    %s57 = sphi 0, %s57
    %s59 = sphi 0, %s57
    %s60 = sphi 0, %s59
    %s74 = sphi 0, %s60
    %s78 = sphi 0, %s78
    %s80 = sphi 0, %s78
    %s81 = sphi 0, %s80
    %s95 = sphi 0, %s81
    %s103 = sphi 0, %s105
    %s106 = sphi 0, %s103
    %s107 = sphi 0, %s106
    %s123 = sphi 0, %s107
  $region4: #{pre_activation.3} parent=0 // loop_header_branch
    %12 = sbr.rel (%p10) target = $region8
  $region5: #{pre_activation.3} parent=0 // loop_body
    %s14 = ssub.s32 %s9, 1
    %s15 = ssub.s32 %s9, 2
    %s22 = sadd.s32 1, %s17
    %p23 = scmp.ge.s32.totalorder %s22, 1
    %s24 = scalar_select %p23, 0, %s22
    %s25 = sadd.s32 1, %s16
    %s26 = scalar_select %p23, %s25, %s16
    %p27 = scmp.ge.s32.totalorder %s26, 2
    %s28 = scalar_select %p27, 0, %s26
    %s29 = ssub.s32 %s16, %s28
    %s30 = ssub.s32 %s17, %s24
    %s31 = sor.u32 %s29, %s30
    %p32 = scmp.eq.s32.totalorder %s31, 0
    %s34 = sadd.s32 %s33, 1
    %s35 = scalar_select %p32, %s33, %s34
    %p38 = pneg %p32
    %p39 = scmp.eq.s32.totalorder %s9, 1
    %p40 = por %p38, %p39
    %p41 = scmp.ne.s32.totalorder %s33, %s36
    %p42 = scmp.eq.s32.totalorder %s9, 0
    %p43 = por %p41, %p42
    %p44 = scmp.ne.s32.totalorder %s33, %s36
    %p45 = scmp.eq.s32.totalorder %s14, 1
    %p46 = por %p44, %p45
    %p47 = scmp.ne.s32.totalorder %s36, %s37
    %p48 = scmp.eq.s32.totalorder %s14, 0
    %p49 = por %p47, %p48
    %p50 = scmp.ne.s32.totalorder %s36, %s37
    %p51 = scmp.eq.s32.totalorder %s15, 1
    %p52 = por %p50, %p51
    %p54 = scmp.ne.s32.totalorder %s37, %s53
    %p55 = scmp.eq.s32.totalorder %s15, 0
    %p56 = por %p54, %p55
    %s58 = sadd.s32 %s57, 1
    %p61 = scmp.eq.s32.totalorder %s9, 1
    %p62 = scmp.ne.s32.totalorder %s57, %s59
    %p63 = scmp.eq.s32.totalorder %s9, 0
    %p64 = por %p62, %p63
    %p65 = scmp.ne.s32.totalorder %s57, %s59
    %p66 = scmp.eq.s32.totalorder %s14, 1
    %p67 = por %p65, %p66
    %p68 = scmp.ne.s32.totalorder %s59, %s60
    %p69 = scmp.eq.s32.totalorder %s14, 0
    %p70 = por %p68, %p69
    %p71 = scmp.ne.s32.totalorder %s59, %s60
    %p72 = scmp.eq.s32.totalorder %s15, 1
    %p73 = por %p71, %p72
    %p75 = scmp.ne.s32.totalorder %s60, %s74
    %p76 = scmp.eq.s32.totalorder %s15, 0
    %p77 = por %p75, %p76
    %s79 = sadd.s32 %s78, 1
    %p82 = scmp.eq.s32.totalorder %s9, 1
    %p83 = scmp.ne.s32.totalorder %s78, %s80
    %p84 = scmp.eq.s32.totalorder %s9, 0
    %p85 = por %p83, %p84
    %p86 = scmp.ne.s32.totalorder %s78, %s80
    %p87 = scmp.eq.s32.totalorder %s14, 1
    %p88 = por %p86, %p87
    %p89 = scmp.ne.s32.totalorder %s80, %s81
    %p90 = scmp.eq.s32.totalorder %s14, 0
    %p91 = por %p89, %p90
    %p92 = scmp.ne.s32.totalorder %s80, %s81
    %p93 = scmp.eq.s32.totalorder %s15, 1
    %p94 = por %p92, %p93
    %p96 = scmp.ne.s32.totalorder %s81, %s95
    %p97 = scmp.eq.s32.totalorder %s15, 0
    %p98 = por %p96, %p97
    %s99 = ssub.s32 %s16, %s28
    %s100 = ssub.s32 %s17, %s24
    %s101 = sor.u32 %s99, %s100
    %p102 = scmp.eq.s32.totalorder %s101, 0
    %s104 = sadd.s32 %s103, 1
    %s105 = scalar_select %p102, %s103, %s104
    %p108 = pneg %p102
    %p109 = scmp.eq.s32.totalorder %s9, 1
    %p110 = por %p108, %p109
    %p111 = scmp.ne.s32.totalorder %s103, %s106
    %p112 = scmp.eq.s32.totalorder %s9, 0
    %p113 = por %p111, %p112
    %p114 = scmp.ne.s32.totalorder %s103, %s106
    %p115 = scmp.eq.s32.totalorder %s14, 1
    %p116 = por %p114, %p115
    %p117 = scmp.ne.s32.totalorder %s106, %s107
    %p118 = scmp.eq.s32.totalorder %s14, 0
    %p119 = por %p117, %p118
    %p120 = scmp.ne.s32.totalorder %s106, %s107
    %p121 = scmp.eq.s32.totalorder %s15, 1
    %p122 = por %p120, %p121
    %p124 = scmp.ne.s32.totalorder %s107, %s123
    %p125 = scmp.eq.s32.totalorder %s15, 0
    %p126 = por %p124, %p125
    %p127 = scmp.le.s32.totalorder 1, %s9
    %p128 = scmp.lt.s32.totalorder %s9, 3
    %p129 = pnand %p127, %p128
    %p130 = pneg %p129
    // Predicated region
    $region9: #{pre_activation.3} parent=5 // pred_check
      _
    $region10: #{pre_activation.3} parent=5 // pred_check_branch
      %132 = sbr.rel (%p129) target = $region12
    $region11: #{pre_activation.3} parent=5 // pred_region
      %s133 = ssub.s32 %s9, 1
      // Predicated region
      $region13: #{pre_activation.3} parent=11 // pred_check
        %p134 = pneg %p70
      $region14: #{pre_activation.3} parent=11 // pred_check_branch
        %136 = sbr.rel (%p134) target = $region16
      $region15: #{pre_activation.3} parent=11 // pred_region
        _
      $region16: #{pre_activation.3} parent=11 // pred_fallthru
        _
      // Predicated region
      $region17: #{pre_activation.3} parent=11 // pred_check
        %p137 = pneg %p91
      $region18: #{pre_activation.3} parent=11 // pred_check_branch
        %139 = sbr.rel (%p137) target = $region20
      $region19: #{pre_activation.3} parent=11 // pred_region
        _
      $region20: #{pre_activation.3} parent=11 // pred_fallthru
        _
    $region12: #{pre_activation.3} parent=5 // pred_fallthru
      _
    %p140 = scmp.lt.s32.totalorder %s9, 2
    // Predicated region
    $region21: #{pre_activation.3} parent=5 // pred_check
      %p141 = pneg %p140
    $region22: #{pre_activation.3} parent=5 // pred_check_branch
      %143 = sbr.rel (%p141) target = $region24
    $region23: #{pre_activation.3} parent=5 // pred_region
      // Predicated region
      $region25: #{pre_activation.3} parent=23 // pred_check
        %p144 = pneg %p43
      $region26: #{pre_activation.3} parent=23 // pred_check_branch
        %146 = sbr.rel (%p144) target = $region28
      $region27: #{pre_activation.3} parent=23 // pred_region
        %s147 = smul.u32 2, %s17
        %p148 = scmp.lt.s32.totalorder %s16, 1
        %s149 = scalar_select %p148, %s16, 1
        %p150 = scmp.lt.s32.totalorder %s147, 1
        %s151 = scalar_select %p150, %s147, 1
        %s152 = smul.addr %s149, 2
        %s153 = sadd.s32 %s151, %s152
        %s154 = smul.addr %s153, 4
        %s155 = scalar_lea.vmem %s0, %s154
        %s156 = smul.u32 2, %s17
      $region28: #{pre_activation.3} parent=23 // pred_fallthru
        _
    $region24: #{pre_activation.3} parent=5 // pred_fallthru
      _
    %p157 = scmp.le.s32.totalorder 1, %s9
    %p158 = scmp.lt.s32.totalorder %s9, 3
    %p159 = pnand %p157, %p158
    %p160 = pneg %p159
    // Predicated region
    $region29: #{pre_activation.3} parent=5 // pred_check
      _
    $region30: #{pre_activation.3} parent=5 // pred_check_branch
      %162 = sbr.rel (%p159) target = $region32
    $region31: #{pre_activation.3} parent=5 // pred_region
      %s163 = ssub.s32 %s9, 1
      %s164 = smul.u32 2, %s19
      %p165 = scmp.lt.s32.totalorder %s18, 1
      %s166 = scalar_select %p165, %s18, 1
      %p167 = scmp.lt.s32.totalorder %s164, 1
      %s168 = scalar_select %p167, %s164, 1
      %s169 = smul.addr %s166, 2
      %s170 = sadd.s32 %s168, %s169
      %s171 = smul.addr %s170, 4
      %s172 = scalar_lea.vmem %s0, %s171
      %p173 = pneg %p49
      %p174 = pneg %p46
      %p175 = pneg %p70
      %p176 = pneg %p67
      %p177 = pneg %p91
      %p178 = pneg %p88
      %p179 = pneg %p119
      %p180 = pneg %p116
      %s181 = smul.u32 2, %s19
      %p182 = scmp.lt.s32.totalorder %s18, 1
      %s183 = scalar_select %p182, %s18, 1
      %p184 = scmp.lt.s32.totalorder %s181, 1
      %s185 = scalar_select %p184, %s181, 1
      %s186 = smul.addr %s183, 2
      %s187 = sadd.s32 %s185, %s186
      %s188 = smul.addr %s187, 4
      %s189 = scalar_lea.vmem %s3, %s188
      %s190 = smul.u32 2, %s19
      %p191 = scmp.lt.s32.totalorder %s18, 1
      %s192 = scalar_select %p191, %s18, 1
      %p193 = scmp.lt.s32.totalorder %s190, 1
      %s194 = scalar_select %p193, %s190, 1
      %s195 = smul.addr %s192, 2
      %s196 = sadd.s32 %s194, %s195
      %s197 = smul.addr %s196, 4
      %s198 = scalar_lea.vmem %s0, %s197
      %s199 = smul.u32 2, %s19
      %s200 = smul.u32 2, %s19
      %p201 = scmp.lt.s32.totalorder %s18, 1
      %s202 = scalar_select %p201, %s18, 1
      %p203 = scmp.lt.s32.totalorder %s200, 1
      %s204 = scalar_select %p203, %s200, 1
      %s205 = smul.addr %s202, 2
      %s206 = sadd.s32 %s204, %s205
      %s207 = smul.addr %s206, 4
      %s208 = scalar_lea.vmem %s3, %s207
      %s209 = smul.u32 2, %s19
      %v210 = vld [vmem:[%s198] sm:$0xff]
      %v211 = vld [vmem:[%s1] sm:$0xf]
      %213 = vset.pattern.permute.xlu0 0
      %214 = vperm.xlu0 %213, %v211
      %v215 = vpop.permute.xlu0 %214
      %v217 = vunpack.c.l.s4 839922192
      %v218 = vunpack.c.0.s8 %v217
      %v219 = vlaneseq
      %v220 = vshrl.u32 %v219, 7
      %v221 = vsub.s32 %v218, %v220
      %v222 = vrot.slane %v215, %v221
      %v224 = vmul.f32 %v210, %v222
      %v225 = vld [vmem:[%s2] sm:$0xf]
      %227 = vset.pattern.permute.xlu0 0
      %228 = vperm.xlu0 %227, %v225
      %v229 = vpop.permute.xlu0 %228
      %v231 = vunpack.c.l.s4 839922192
      %v232 = vunpack.c.0.s8 %v231
      %v233 = vlaneseq
      %v234 = vshrl.u32 %v233, 7
      %v235 = vsub.s32 %v232, %v234
      %v236 = vrot.slane %v229, %v235
      %v238 = vadd.f32 %v224, %v236
      %v239 = vmax.f32 %v238, 0.0
      %240 = vst [vmem:[%s208] sm:$0xff] %v239
      %s241 = smul.u32 2, %s19
      %p242 = scmp.lt.s32.totalorder %s18, 1
      %s243 = scalar_select %p242, %s18, 1
      %p244 = scmp.lt.s32.totalorder %s241, 1
      %s245 = scalar_select %p244, %s241, 1
      %s246 = smul.addr %s243, 2
      %s247 = sadd.s32 %s245, %s246
      %s248 = smul.addr %s247, 4
      %s249 = scalar_lea.vmem %s3, %s248
      // Predicated region
      $region33: #{pre_activation.3} parent=31 // pred_check
        %p250 = pneg %p116
      $region34: #{pre_activation.3} parent=31 // pred_check_branch
        %252 = sbr.rel (%p250) target = $region36
      $region35: #{pre_activation.3} parent=31 // pred_region
        %s253 = smul.u32 2, %s19
      $region36: #{pre_activation.3} parent=31 // pred_fallthru
        _
    $region32: #{pre_activation.3} parent=5 // pred_fallthru
      _
    %p254 = scmp.le.s32.totalorder 2, %s9
    // Predicated region
    $region37: #{pre_activation.3} parent=5 // pred_check
      %p255 = pneg %p254
    $region38: #{pre_activation.3} parent=5 // pred_check_branch
      %257 = sbr.rel (%p255) target = $region40
    $region39: #{pre_activation.3} parent=5 // pred_region
      %s258 = ssub.s32 %s9, 2
      // Predicated region
      $region41: #{pre_activation.3} parent=39 // pred_check
        %p259 = pneg %p122
      $region42: #{pre_activation.3} parent=39 // pred_check_branch
        %261 = sbr.rel (%p259) target = $region44
      $region43: #{pre_activation.3} parent=39 // pred_region
        %s262 = smul.u32 2, %s21
        %p263 = scmp.lt.s32.totalorder %s20, 1
        %s264 = scalar_select %p263, %s20, 1
        %p265 = scmp.lt.s32.totalorder %s262, 1
        %s266 = scalar_select %p265, %s262, 1
        %s267 = smul.addr %s264, 2
        %s268 = sadd.s32 %s266, %s267
        %s269 = smul.addr %s268, 4
        %s270 = scalar_lea.vmem %s3, %s269
      $region44: #{pre_activation.3} parent=39 // pred_fallthru
        _
    $region40: #{pre_activation.3} parent=5 // pred_fallthru
      _
  $region6: #{pre_activation.3} parent=0 // loop_footer
    %s13 = sadd.s32 1, %s9
  $region7: #{pre_activation.3} parent=0 // loop_footer_branch
    %8 = sbr.rel target = $region3
  $region8: #{pre_activation.3} parent=0 // loop_exit
    _

</llo_original>
